<compile_context>
chip_gen: v5e
topology: v5e:2x2
jax: 0.10.0
libtpu: 0.0.40
codegen_flags: <defaults>
</compile_context>

<pallas_src>
import functools

import jax
import jax.numpy as jnp
from jax.experimental import pallas as pl
from jax.experimental.pallas import tpu as pltpu

K_IN = 28 * 28   # 784
HID = 128
N_OUT = 10
N_PAD = 128      # logit lanes padded to 128 for lane-dense stores


def _round_up(v, m):
    return ((v + m - 1) // m) * m


def mlp_kernel(x_ref, w1_ref, b1_ref, w2_ref, b2_ref, o_ref):
    # Fused input cast: activations read from HBM once (f32), cast in-register.
    x = x_ref[...].astype(jnp.bfloat16)
    # fc1 on the MXU (bf16 inputs, f32 accumulation); bias + ReLU in f32.
    h = jnp.dot(x, w1_ref[...], preferred_element_type=jnp.float32)
    h = jnp.maximum(h + b1_ref[...], 0.0)
    # fc2 fully in f32 on the resident h tile (avoids a second quantization).
    out = jnp.dot(h, w2_ref[...], preferred_element_type=jnp.float32)
    out = out + b2_ref[...]
    o_ref[...] = out.astype(o_ref.dtype)   # bf16, 128-lane unmasked store


@functools.partial(jax.jit, static_argnames=("tb",))
def simple_nn_forward(x, w1, b1, w2, b2, *, tb=1024):
    """Forward of SimpleNN: relu(x @ w1 + b1) @ w2 + b2.

    x:  (B, 1, 28, 28) or (B, 784)
    w1: (784, 128), b1: (128,) or (1, 128)   [w = torch fc1.weight.T]
    w2: (128, 10),  b2: (10,)  or (1, 10)    [w = torch fc2.weight.T]
    Returns (B, 10) float32 logits.
    """
    B = x.shape[0]
    x2d = x.reshape(B, K_IN).astype(jnp.float32)   # matches torch x.view(-1, 784)

    # Accept torch-style 1-D biases.
    b1f = b1.reshape(1, HID).astype(jnp.float32)
    b2f = b2.reshape(1, N_OUT).astype(jnp.float32)

    # One-time tiny weight prep (no activation-sized copies).
    w1b = w1.astype(jnp.bfloat16)                                       # (784, 128)
    w2p = jnp.pad(w2.astype(jnp.float32), ((0, 0), (0, N_PAD - N_OUT))) # (128, 128)
    b2p = jnp.pad(b2f, ((0, 0), (0, N_PAD - N_OUT)))                    # (1, 128)

    # Batch tiling. 16 = bf16-output sublane minimum (also covers f32's 8).
    Bp16 = _round_up(max(B, 16), 16)
    if Bp16 <= tb:
        Bp = Bp16
        # >=2 grid steps when cheap, so both v7x TensorCores get work.
        TB = Bp // 2 if (Bp >= 32 and Bp % 32 == 0) else Bp
    else:
        TB = _round_up(tb, 256)
        Bp = _round_up(B, TB)
    if Bp != B:
        # Single pad pass on the raw f32 view (the only activation copy made).
        x2d = jnp.pad(x2d, ((0, Bp - B), (0, 0)))

    grid = (Bp // TB,)
    flops = 2 * Bp * (K_IN * HID + HID * N_PAD)
    bytes_accessed = (Bp * K_IN * 4                      # streamed f32 activations
                      + K_IN * HID * 2 + HID * N_PAD * 4  # resident weights
                      + HID * 4 + N_PAD * 4               # biases
                      + Bp * N_PAD * 2)                    # bf16 padded logits

    out = pl.pallas_call(
        mlp_kernel,
        out_shape=jax.ShapeDtypeStruct((Bp, N_PAD), jnp.bfloat16),
        grid=grid,
        in_specs=[
            pl.BlockSpec((TB, K_IN), lambda i: (i, 0)),    # x tile (streams, full 784 lanes)
            pl.BlockSpec((K_IN, HID), lambda i: (0, 0)),   # w1 (resident, bf16)
            pl.BlockSpec((1, HID), lambda i: (0, 0)),      # b1 (resident, f32)
            pl.BlockSpec((HID, N_PAD), lambda i: (0, 0)),  # w2 padded (resident, f32)
            pl.BlockSpec((1, N_PAD), lambda i: (0, 0)),    # b2 padded (resident, f32)
        ],
        out_specs=pl.BlockSpec((TB, N_PAD), lambda i: (i, 0)),
        compiler_params=pltpu.CompilerParams(
            dimension_semantics=("parallel",),
            vmem_limit_bytes=32 * 1024 * 1024,
        ),
        cost_estimate=pl.CostEstimate(
            flops=flops, transcendentals=0, bytes_accessed=bytes_accessed),
    )(x2d, w1b, b1f, w2p, b2p)

    # Drop batch padding + zero logit lanes; restore the module's f32 output dtype.
    return out[:B, :N_OUT].astype(jnp.float32)


def init_params(key):
    """Mimics nn.Linear init: U(-1/sqrt(fan_in), 1/sqrt(fan_in)); weights stored (in, out)."""
    k1, k2, k3, k4 = jax.random.split(key, 4)
    bound1 = 1.0 / jnp.sqrt(jnp.float32(K_IN))
    bound2 = 1.0 / jnp.sqrt(jnp.float32(HID))
    w1 = jax.random.uniform(k1, (K_IN, HID), jnp.float32, -bound1, bound1)
    b1 = jax.random.uniform(k2, (HID,), jnp.float32, -bound1, bound1)
    w2 = jax.random.uniform(k3, (HID, N_OUT), jnp.float32, -bound2, bound2)
    b2 = jax.random.uniform(k4, (N_OUT,), jnp.float32, -bound2, bound2)
    return w1, b1, w2, b2


if __name__ == "__main__":
    key = jax.random.PRNGKey(0)
    kx, kp = jax.random.split(key)
    batch = 8
    # MNIST-like input: (B, 1, 28, 28); forward flattens to (B, 784).
    x = jax.random.normal(kx, (batch, 1, 28, 28), jnp.float32)
    w1, b1, w2, b2 = init_params(kp)

    out = simple_nn_forward(x, w1, b1, w2, b2)
    out = jax.block_until_ready(out)

    # Reference check in plain JAX (f32); tolerance reflects bf16 fc1 input
    # cast + bf16 logit writeback (fc2 itself runs in f32).
    x2d = x.reshape(batch, K_IN)
    ref = jnp.maximum(x2d @ w1 + b1, 0.0) @ w2 + b2
    assert out.shape == (batch, N_OUT)
    max_err = float(jnp.max(jnp.abs(out - ref)))
    assert jnp.allclose(out, ref, atol=5e-2, rtol=5e-2), max_err

    print("KERNEL_OK")
</pallas_src>

<mosaic_0001>
module attributes {stable_mosaic.version = 11 : i64} {
  func.func @mlp_kernel(%arg0: i32, %arg1: memref<16x784xf32, #tpu.memory_space<vmem>>, %arg2: memref<784x128xbf16, #tpu.memory_space<vmem>>, %arg3: memref<1x128xf32, #tpu.memory_space<vmem>>, %arg4: memref<128x128xf32, #tpu.memory_space<vmem>>, %arg5: memref<1x128xf32, #tpu.memory_space<vmem>>, %arg6: memref<16x128xbf16, #tpu.memory_space<vmem>>) attributes {dimension_semantics = [#tpu.dimension_semantics<parallel>], iteration_bounds = array<i64: 1>, scalar_prefetch = 0 : i64, scratch_operands = 0 : i64, tpu.core_type = #tpu.core_type<tc>, window_params = [{transform_indices = @transform_0, window_bounds = array<i64: 16, 784>}, {pipeline_mode = #tpu.pipeline_mode<synchronous>, transform_indices = @transform_1, window_bounds = array<i64: 784, 128>}, {pipeline_mode = #tpu.pipeline_mode<synchronous>, transform_indices = @transform_2, window_bounds = array<i64: 1, 128>}, {pipeline_mode = #tpu.pipeline_mode<synchronous>, transform_indices = @transform_3, window_bounds = array<i64: 128, 128>}, {pipeline_mode = #tpu.pipeline_mode<synchronous>, transform_indices = @transform_4, window_bounds = array<i64: 1, 128>}, {transform_indices = @transform_5, window_bounds = array<i64: 16, 128>}]} {
    %c0 = arith.constant 0 : index
    %c0_0 = arith.constant 0 : index
    %0 = vector.load %arg1[%c0, %c0_0] : memref<16x784xf32, #tpu.memory_space<vmem>>, vector<16x784xf32>
    %1 = arith.truncf %0 : vector<16x784xf32> to vector<16x784xbf16>
    %c0_1 = arith.constant 0 : index
    %c0_2 = arith.constant 0 : index
    %2 = vector.load %arg2[%c0_1, %c0_2] : memref<784x128xbf16, #tpu.memory_space<vmem>>, vector<784x128xbf16>
    %cst = arith.constant dense<0.000000e+00> : vector<16x128xf32>
    %3 = tpu.matmul %1, %2, %cst {dimension_numbers = #tpu.dot_dimension_numbers<[1], [0], [0], [1], [0, 0, 1, 1], [], []>} : vector<16x784xbf16>, vector<784x128xbf16>, vector<16x128xf32> -> vector<16x128xf32>
    %c0_3 = arith.constant 0 : index
    %c0_4 = arith.constant 0 : index
    %4 = vector.load %arg3[%c0_3, %c0_4] : memref<1x128xf32, #tpu.memory_space<vmem>>, vector<1x128xf32>
    %5 = vector.broadcast %4 : vector<1x128xf32> to vector<16x128xf32>
    %6 = arith.addf %3, %5 : vector<16x128xf32>
    %cst_5 = arith.constant 0.000000e+00 : f32
    %7 = vector.broadcast %cst_5 : f32 to vector<16x128xf32>
    %8 = arith.maximumf %6, %7 : vector<16x128xf32>
    %c0_6 = arith.constant 0 : index
    %c0_7 = arith.constant 0 : index
    %9 = vector.load %arg4[%c0_6, %c0_7] : memref<128x128xf32, #tpu.memory_space<vmem>>, vector<128x128xf32>
    %cst_8 = arith.constant dense<0.000000e+00> : vector<16x128xf32>
    %10 = tpu.matmul %8, %9, %cst_8 {dimension_numbers = #tpu.dot_dimension_numbers<[1], [0], [0], [1], [0, 0, 1, 1], [], []>} : vector<16x128xf32>, vector<128x128xf32>, vector<16x128xf32> -> vector<16x128xf32>
    %c0_9 = arith.constant 0 : index
    %c0_10 = arith.constant 0 : index
    %11 = vector.load %arg5[%c0_9, %c0_10] : memref<1x128xf32, #tpu.memory_space<vmem>>, vector<1x128xf32>
    %12 = vector.broadcast %11 : vector<1x128xf32> to vector<16x128xf32>
    %13 = arith.addf %10, %12 : vector<16x128xf32>
    %14 = arith.truncf %13 : vector<16x128xf32> to vector<16x128xbf16>
    %c0_11 = arith.constant 0 : index
    %c0_12 = arith.constant 0 : index
    %15 = vector.load %arg6[%c0_11, %c0_12] : memref<16x128xbf16, #tpu.memory_space<vmem>>, vector<16x128xbf16>
    tpu.vector_store %arg6[%c0_11, %c0_12], %14 {strides = array<i32>} : memref<16x128xbf16, #tpu.memory_space<vmem>>, vector<16x128xbf16>,
    return
  }
  func.func @transform_0(%arg0: i32) -> (i32, i32) {
    %c0_i32 = arith.constant 0 : i32
    %c0_i32_0 = arith.constant 0 : i32
    return %arg0, %c0_i32 : i32, i32
  }
  func.func @transform_1(%arg0: i32) -> (i32, i32) {
    %c0_i32 = arith.constant 0 : i32
    %c0_i32_0 = arith.constant 0 : i32
    %c0_i32_1 = arith.constant 0 : i32
    return %c0_i32, %c0_i32_0 : i32, i32
  }
  func.func @transform_2(%arg0: i32) -> (i32, i32) {
    %c0_i32 = arith.constant 0 : i32
    %c0_i32_0 = arith.constant 0 : i32
    %c0_i32_1 = arith.constant 0 : i32
    return %c0_i32, %c0_i32_0 : i32, i32
  }
  func.func @transform_3(%arg0: i32) -> (i32, i32) {
    %c0_i32 = arith.constant 0 : i32
    %c0_i32_0 = arith.constant 0 : i32
    %c0_i32_1 = arith.constant 0 : i32
    return %c0_i32, %c0_i32_0 : i32, i32
  }
  func.func @transform_4(%arg0: i32) -> (i32, i32) {
    %c0_i32 = arith.constant 0 : i32
    %c0_i32_0 = arith.constant 0 : i32
    %c0_i32_1 = arith.constant 0 : i32
    return %c0_i32, %c0_i32_0 : i32, i32
  }
  func.func @transform_5(%arg0: i32) -> (i32, i32) {
    %c0_i32 = arith.constant 0 : i32
    %c0_i32_0 = arith.constant 0 : i32
    return %arg0, %c0_i32 : i32, i32
  }
}

</mosaic_0001>

<llo_original>
// kernel: simple_nn_forward.1
$region0: #{simple_nn_forward.1}
  #allocation0 [shape = 'u32[]', space=smem, size = 0x4, offset = 0x4, fixed_abs, tag = 'smem constant byte address 0x4 - core index']
  #allocation1 [shape = 'u32[72,128]{1,0:T(1,128)}', space=vmem, size = 0x9000, scoped, tag = 'internal scratch']
  %s0 = inlined_call_operand.vmem [shape: f32[16,784], index: 0, kind: input, shape index: {}]
  %s1 = inlined_call_operand.vmem [shape: bf16[784,128], index: 1, kind: input, shape index: {}]
  %s2 = inlined_call_operand.vmem [shape: f32[1,128], index: 2, kind: input, shape index: {}]
  %s3 = inlined_call_operand.vmem [shape: f32[128,128], index: 3, kind: input, shape index: {}]
  %s4 = inlined_call_operand.vmem [shape: f32[1,128], index: 4, kind: input, shape index: {}]
  %s5 = inlined_call_operand.vmem [shape: bf16[16,128], index: 5, kind: output, shape index: {}]
  %s6 = sld [smem:[#allocation0]]
  $region30: #{simple_nn_forward.1} parent=0
    _
  %s8 = ssub.s32 1, %s6
  %s9 = scalar_select 0, %s8, %s6
  // Predicated region
  $region2: #{simple_nn_forward.1} parent=0 // pred_check
    _
  $region3: #{simple_nn_forward.1} parent=0 // pred_check_branch
    %11 = sbr.rel (0) target = $region5
  $region4: #{simple_nn_forward.1} parent=0 // pred_region
    _
  $region5: #{simple_nn_forward.1} parent=0 // pred_fallthru
    _
  // Predicated region
  $region6: #{simple_nn_forward.1} parent=0 // pred_check
    _
  $region7: #{simple_nn_forward.1} parent=0 // pred_check_branch
    %13 = sbr.rel (0) target = $region9
  $region8: #{simple_nn_forward.1} parent=0 // pred_region
    _
  $region9: #{simple_nn_forward.1} parent=0 // pred_fallthru
    _
  // Predicated region
  $region10: #{simple_nn_forward.1} parent=0 // pred_check
    _
  $region11: #{simple_nn_forward.1} parent=0 // pred_check_branch
    %15 = sbr.rel (0) target = $region13
  $region12: #{simple_nn_forward.1} parent=0 // pred_region
    _
  $region13: #{simple_nn_forward.1} parent=0 // pred_fallthru
    _
  // Predicated region
  $region14: #{simple_nn_forward.1} parent=0 // pred_check
    _
  $region15: #{simple_nn_forward.1} parent=0 // pred_check_branch
    %17 = sbr.rel (0) target = $region17
  $region16: #{simple_nn_forward.1} parent=0 // pred_region
    _
  $region17: #{simple_nn_forward.1} parent=0 // pred_fallthru
    _
  // Predicated region
  $region18: #{simple_nn_forward.1} parent=0 // pred_check
    _
  $region19: #{simple_nn_forward.1} parent=0 // pred_check_branch
    %19 = sbr.rel (0) target = $region21
  $region20: #{simple_nn_forward.1} parent=0 // pred_region
    _
  $region21: #{simple_nn_forward.1} parent=0 // pred_fallthru
    _
  %v21 = vld [vmem:[%s0] sm:$0xff]
  %v22 = vld [vmem:[%s0 + $0x8] sm:$0xff]
  %v23 = vld [vmem:[%s0 + $0x10] sm:$0xff]
  %v24 = vld [vmem:[%s0 + $0x18] sm:$0xff]
  %v25 = vld [vmem:[%s0 + $0x20] sm:$0xff]
  %v26 = vld [vmem:[%s0 + $0x28] sm:$0xff]
  %v27 = vld [vmem:[%s0 + $0x30] sm:$0xff]
  %v28 = vld [vmem:[%s0 + $0x38] sm:$0xff]
  %v29 = vld [vmem:[%s0 + $0x40] sm:$0xff]
  %v30 = vld [vmem:[%s0 + $0x48] sm:$0xff]
  %v31 = vld [vmem:[%s0 + $0x50] sm:$0xff]
  %v32 = vld [vmem:[%s0 + $0x58] sm:$0xff]
  %v33 = vld [vmem:[%s0 + $0x60] sm:$0xff]
  %v34 = vld [vmem:[%s0 + $0x68] sm:$0xff]
  %v35 = vpack.c.bf16 %v28, %v21
  %v36 = vpack.c.bf16 %v29, %v22
  %v37 = vpack.c.bf16 %v30, %v23
  %v38 = vpack.c.bf16 %v31, %v24
  %v39 = vpack.c.bf16 %v32, %v25
  %v40 = vpack.c.bf16 %v33, %v26
  %v41 = vpack.c.bf16 %v34, %v27
  %v42 = vld [vmem:[%s1] sm:$0xf]
  %v43 = vld [vmem:[%s1 + $0x4] sm:$0xf]
  %v44 = vld [vmem:[%s1 + $0x8] sm:$0xf]
  %v45 = vld [vmem:[%s1 + $0xc] sm:$0xf]
  %v46 = vld [vmem:[%s1 + $0x10] sm:$0xf]
  %v47 = vld [vmem:[%s1 + $0x14] sm:$0xf]
  %v48 = vld [vmem:[%s1 + $0x18] sm:$0xf]
  %v49 = vld [vmem:[%s1 + $0x1c] sm:$0xf]
  %v50 = vld [vmem:[%s1 + $0x20] sm:$0xf]
  %v51 = vld [vmem:[%s1 + $0x24] sm:$0xf]
  %v52 = vld [vmem:[%s1 + $0x28] sm:$0xf]
  %v53 = vld [vmem:[%s1 + $0x2c] sm:$0xf]
  %v54 = vld [vmem:[%s1 + $0x30] sm:$0xf]
  %v55 = vld [vmem:[%s1 + $0x34] sm:$0xf]
  %v56 = vld [vmem:[%s1 + $0x38] sm:$0xf]
  %v57 = vld [vmem:[%s1 + $0x3c] sm:$0xf]
  %v58 = vld [vmem:[%s1 + $0x40] sm:$0xf]
  %v59 = vld [vmem:[%s1 + $0x44] sm:$0xf]
  %v60 = vld [vmem:[%s1 + $0x48] sm:$0xf]
  %v61 = vld [vmem:[%s1 + $0x4c] sm:$0xf]
  %v62 = vld [vmem:[%s1 + $0x50] sm:$0xf]
  %v63 = vld [vmem:[%s1 + $0x54] sm:$0xf]
  %v64 = vld [vmem:[%s1 + $0x58] sm:$0xf]
  %v65 = vld [vmem:[%s1 + $0x5c] sm:$0xf]
  %v66 = vld [vmem:[%s1 + $0x60] sm:$0xf]
  %v67 = vld [vmem:[%s1 + $0x64] sm:$0xf]
  %v68 = vld [vmem:[%s1 + $0x68] sm:$0xf]
  %v69 = vld [vmem:[%s1 + $0x6c] sm:$0xf]
  %v70 = vld [vmem:[%s1 + $0x70] sm:$0xf]
  %v71 = vld [vmem:[%s1 + $0x74] sm:$0xf]
  %v72 = vld [vmem:[%s1 + $0x78] sm:$0xf]
  %v73 = vld [vmem:[%s1 + $0x7c] sm:$0xf]
  %v74 = vld [vmem:[%s1 + $0x80] sm:$0xf]
  %v75 = vld [vmem:[%s1 + $0x84] sm:$0xf]
  %v76 = vld [vmem:[%s1 + $0x88] sm:$0xf]
  %v77 = vld [vmem:[%s1 + $0x8c] sm:$0xf]
  %v78 = vld [vmem:[%s1 + $0x90] sm:$0xf]
  %v79 = vld [vmem:[%s1 + $0x94] sm:$0xf]
  %v80 = vld [vmem:[%s1 + $0x98] sm:$0xf]
  %v81 = vld [vmem:[%s1 + $0x9c] sm:$0xf]
  %v82 = vld [vmem:[%s1 + $0xa0] sm:$0xf]
  %v83 = vld [vmem:[%s1 + $0xa4] sm:$0xf]
  %v84 = vld [vmem:[%s1 + $0xa8] sm:$0xf]
  %v85 = vld [vmem:[%s1 + $0xac] sm:$0xf]
  %v86 = vld [vmem:[%s1 + $0xb0] sm:$0xf]
  %v87 = vld [vmem:[%s1 + $0xb4] sm:$0xf]
  %v88 = vld [vmem:[%s1 + $0xb8] sm:$0xf]
  %v89 = vld [vmem:[%s1 + $0xbc] sm:$0xf]
  %v90 = vld [vmem:[%s1 + $0xc0] sm:$0xf]
  %v91 = vld [vmem:[%s1 + $0xc4] sm:$0xf]
  %v92 = vld [vmem:[%s1 + $0xc8] sm:$0xf]
  %v93 = vld [vmem:[%s1 + $0xcc] sm:$0xf]
  %v94 = vld [vmem:[%s1 + $0xd0] sm:$0xf]
  %v95 = vld [vmem:[%s1 + $0xd4] sm:$0xf]
  %v96 = vld [vmem:[%s1 + $0xd8] sm:$0xf]
  %v97 = vld [vmem:[%s1 + $0xdc] sm:$0xf]
  %v98 = vld [vmem:[%s1 + $0xe0] sm:$0xf]
  %v99 = vld [vmem:[%s1 + $0xe4] sm:$0xf]
  %v100 = vld [vmem:[%s1 + $0xe8] sm:$0xf]
  %v101 = vld [vmem:[%s1 + $0xec] sm:$0xf]
  %v102 = vld [vmem:[%s1 + $0xf0] sm:$0xf]
  %v103 = vld [vmem:[%s1 + $0xf4] sm:$0xf]
  %v104 = vld [vmem:[%s1 + $0xf8] sm:$0xf]
  %v105 = vld [vmem:[%s1 + $0xfc] sm:$0xf]
  %v106 = vld [vmem:[%s1 + $0x100] sm:$0xf]
  %v107 = vld [vmem:[%s1 + $0x104] sm:$0xf]
  %v108 = vld [vmem:[%s1 + $0x108] sm:$0xf]
  %v109 = vld [vmem:[%s1 + $0x10c] sm:$0xf]
  %v110 = vld [vmem:[%s1 + $0x110] sm:$0xf]
  %v111 = vld [vmem:[%s1 + $0x114] sm:$0xf]
  %v112 = vld [vmem:[%s1 + $0x118] sm:$0xf]
  %v113 = vld [vmem:[%s1 + $0x11c] sm:$0xf]
  %v114 = vld [vmem:[%s1 + $0x120] sm:$0xf]
  %v115 = vld [vmem:[%s1 + $0x124] sm:$0xf]
  %v116 = vld [vmem:[%s1 + $0x128] sm:$0xf]
  %v117 = vld [vmem:[%s1 + $0x12c] sm:$0xf]
  %v118 = vld [vmem:[%s1 + $0x130] sm:$0xf]
  %v119 = vld [vmem:[%s1 + $0x134] sm:$0xf]
  %v120 = vld [vmem:[%s1 + $0x138] sm:$0xf]
  %v121 = vld [vmem:[%s1 + $0x13c] sm:$0xf]
  %v122 = vld [vmem:[%s1 + $0x140] sm:$0xf]
  %v123 = vld [vmem:[%s1 + $0x144] sm:$0xf]
  %v124 = vld [vmem:[%s1 + $0x148] sm:$0xf]
  %v125 = vld [vmem:[%s1 + $0x14c] sm:$0xf]
  %v126 = vld [vmem:[%s1 + $0x150] sm:$0xf]
  %v127 = vld [vmem:[%s1 + $0x154] sm:$0xf]
  %v128 = vld [vmem:[%s1 + $0x158] sm:$0xf]
  %v129 = vld [vmem:[%s1 + $0x15c] sm:$0xf]
  %v130 = vld [vmem:[%s1 + $0x160] sm:$0xf]
  %v131 = vld [vmem:[%s1 + $0x164] sm:$0xf]
  %v132 = vld [vmem:[%s1 + $0x168] sm:$0xf]
  %v133 = vld [vmem:[%s1 + $0x16c] sm:$0xf]
  %v134 = vld [vmem:[%s1 + $0x170] sm:$0xf]
  %v135 = vld [vmem:[%s1 + $0x174] sm:$0xf]
  %v136 = vld [vmem:[%s1 + $0x178] sm:$0xf]
  %v137 = vld [vmem:[%s1 + $0x17c] sm:$0xf]
  %v138 = vld [vmem:[%s1 + $0x180] sm:$0xf]
  %v139 = vld [vmem:[%s1 + $0x184] sm:$0xf]
  %v140 = vld [vmem:[%s2] sm:$0x1]
  %v142 = vperm.slane %v140, 0
  %v242 = vunpack.c.l.b16 %v42
  %v243 = vunpack.c.l.b16 %v43
  %v244 = vunpack.c.l.b16 %v44
  %v245 = vunpack.c.l.b16 %v45
  %v246 = vunpack.c.l.b16 %v46
  %v247 = vunpack.c.l.b16 %v47
  %v248 = vunpack.c.l.b16 %v48
  %v249 = vunpack.c.l.b16 %v49
  %v250 = vunpack.c.l.b16 %v50
  %v251 = vunpack.c.l.b16 %v51
  %v252 = vunpack.c.l.b16 %v52
  %v253 = vunpack.c.l.b16 %v53
  %v254 = vunpack.c.l.b16 %v54
  %v255 = vunpack.c.l.b16 %v55
  %v256 = vunpack.c.l.b16 %v56
  %v257 = vunpack.c.l.b16 %v57
  %v258 = vunpack.c.l.b16 %v58
  %v259 = vunpack.c.l.b16 %v59
  %v260 = vunpack.c.l.b16 %v60
  %v261 = vunpack.c.l.b16 %v61
  %v262 = vunpack.c.l.b16 %v62
  %v263 = vunpack.c.l.b16 %v63
  %v264 = vunpack.c.l.b16 %v64
  %v265 = vunpack.c.l.b16 %v65
  %v266 = vunpack.c.l.b16 %v66
  %v267 = vunpack.c.l.b16 %v67
  %v268 = vunpack.c.l.b16 %v68
  %v269 = vunpack.c.l.b16 %v69
  %v270 = vunpack.c.l.b16 %v70
  %v271 = vunpack.c.l.b16 %v71
  %v272 = vunpack.c.l.b16 %v72
  %v273 = vunpack.c.l.b16 %v73
  %v274 = vunpack.c.l.b16 %v74
  %v275 = vunpack.c.l.b16 %v75
  %v276 = vunpack.c.l.b16 %v76
  %v277 = vunpack.c.l.b16 %v77
  %v278 = vunpack.c.l.b16 %v78
  %v279 = vunpack.c.l.b16 %v79
  %v280 = vunpack.c.l.b16 %v80
  %v281 = vunpack.c.l.b16 %v81
  %v282 = vunpack.c.l.b16 %v82
  %v283 = vunpack.c.l.b16 %v83
  %v284 = vunpack.c.l.b16 %v84
  %v285 = vunpack.c.l.b16 %v85
  %v286 = vunpack.c.l.b16 %v86
  %v287 = vunpack.c.l.b16 %v87
  %v288 = vunpack.c.l.b16 %v88
  %v289 = vunpack.c.l.b16 %v89
  %v290 = vunpack.c.l.b16 %v90
  %v291 = vunpack.c.l.b16 %v91
  %v292 = vunpack.c.l.b16 %v92
  %v293 = vunpack.c.l.b16 %v93
  %v294 = vunpack.c.l.b16 %v94
  %v295 = vunpack.c.l.b16 %v95
  %v296 = vunpack.c.l.b16 %v96
  %v297 = vunpack.c.l.b16 %v97
  %v298 = vunpack.c.l.b16 %v98
  %v299 = vunpack.c.l.b16 %v99
  %v300 = vunpack.c.l.b16 %v100
  %v301 = vunpack.c.l.b16 %v101
  %v302 = vunpack.c.l.b16 %v102
  %v303 = vunpack.c.l.b16 %v103
  %v304 = vunpack.c.l.b16 %v104
  %v305 = vunpack.c.l.b16 %v105
  %v306 = vunpack.c.l.b16 %v106
  %v307 = vunpack.c.l.b16 %v107
  %v308 = vunpack.c.l.b16 %v108
  %v309 = vunpack.c.l.b16 %v109
  %v310 = vunpack.c.l.b16 %v110
  %v311 = vunpack.c.l.b16 %v111
  %v312 = vunpack.c.l.b16 %v112
  %v313 = vunpack.c.l.b16 %v113
  %v314 = vunpack.c.l.b16 %v114
  %v315 = vunpack.c.l.b16 %v115
  %v316 = vunpack.c.l.b16 %v116
  %v317 = vunpack.c.l.b16 %v117
  %v318 = vunpack.c.l.b16 %v118
  %v319 = vunpack.c.l.b16 %v119
  %v320 = vunpack.c.l.b16 %v120
  %v321 = vunpack.c.l.b16 %v121
  %v322 = vunpack.c.l.b16 %v122
  %v323 = vunpack.c.l.b16 %v123
  %v324 = vunpack.c.l.b16 %v124
  %v325 = vunpack.c.l.b16 %v125
  %v326 = vunpack.c.l.b16 %v126
  %v327 = vunpack.c.l.b16 %v127
  %v328 = vunpack.c.l.b16 %v128
  %v329 = vunpack.c.l.b16 %v129
  %v330 = vunpack.c.l.b16 %v130
  %v331 = vunpack.c.l.b16 %v131
  %v332 = vunpack.c.l.b16 %v132
  %v333 = vunpack.c.l.b16 %v133
  %v334 = vunpack.c.l.b16 %v134
  %v335 = vunpack.c.l.b16 %v135
  %v336 = vunpack.c.l.b16 %v136
  %v337 = vunpack.c.l.b16 %v137
  %v338 = vunpack.c.l.b16 %v138
  %v339 = vunpack.c.l.b16 %v139
  %v340 = vpack.c.b16 %v243, %v242
  %v341 = vpack.c.b16 %v245, %v244
  %v342 = vpack.c.b16 %v247, %v246
  %v343 = vpack.c.b16 %v249, %v248
  %v344 = vpack.c.b16 %v251, %v250
  %v345 = vpack.c.b16 %v253, %v252
  %v346 = vpack.c.b16 %v255, %v254
  %v347 = vpack.c.b16 %v257, %v256
  %v348 = vpack.c.b16 %v259, %v258
  %v349 = vpack.c.b16 %v261, %v260
  %v350 = vpack.c.b16 %v263, %v262
  %v351 = vpack.c.b16 %v265, %v264
  %v352 = vpack.c.b16 %v267, %v266
  %v353 = vpack.c.b16 %v269, %v268
  %v354 = vpack.c.b16 %v271, %v270
  %v355 = vpack.c.b16 %v273, %v272
  %v356 = vpack.c.b16 %v275, %v274
  %v357 = vpack.c.b16 %v277, %v276
  %v358 = vpack.c.b16 %v279, %v278
  %v359 = vpack.c.b16 %v281, %v280
  %v360 = vpack.c.b16 %v283, %v282
  %v361 = vpack.c.b16 %v285, %v284
  %v362 = vpack.c.b16 %v287, %v286
  %v363 = vpack.c.b16 %v289, %v288
  %v364 = vpack.c.b16 %v291, %v290
  %v365 = vpack.c.b16 %v293, %v292
  %v366 = vpack.c.b16 %v295, %v294
  %v367 = vpack.c.b16 %v297, %v296
  %v368 = vpack.c.b16 %v299, %v298
  %v369 = vpack.c.b16 %v301, %v300
  %v370 = vpack.c.b16 %v303, %v302
  %v371 = vpack.c.b16 %v305, %v304
  %v372 = vpack.c.b16 %v307, %v306
  %v373 = vpack.c.b16 %v309, %v308
  %v374 = vpack.c.b16 %v311, %v310
  %v375 = vpack.c.b16 %v313, %v312
  %v376 = vpack.c.b16 %v315, %v314
  %v377 = vpack.c.b16 %v317, %v316
  %v378 = vpack.c.b16 %v319, %v318
  %v379 = vpack.c.b16 %v321, %v320
  %v380 = vpack.c.b16 %v323, %v322
  %v381 = vpack.c.b16 %v325, %v324
  %v382 = vpack.c.b16 %v327, %v326
  %v383 = vpack.c.b16 %v329, %v328
  %v384 = vpack.c.b16 %v331, %v330
  %v385 = vpack.c.b16 %v333, %v332
  %v386 = vpack.c.b16 %v335, %v334
  %v387 = vpack.c.b16 %v337, %v336
  %v388 = vpack.c.b16 %v339, %v338
  %vm438 = vcmask 130048
  %v440 = vsel %vm438, %v41, 0
  %442 = vmatpush.bf16.msra.mxu0 %v347
  %443 = vmatpush.bf16.msra.mxu0 %v346
  %444 = vmatpush.bf16.msra.mxu0 %v345
  %445 = vmatpush.bf16.msra.mxu0 %v344
  %446 = vmatpush.bf16.msra.mxu0 %v343
  %447 = vmatpush.bf16.msra.mxu0 %v342
  %448 = vmatpush.bf16.msra.mxu0 %v341
  %449 = vmatpush.bf16.msra.mxu0 %v340
  %450 = vmatmul.bf16.gmra.mxu0 %v35
  %v451 = vpop.f32.mrf.mxu0
  %v452 = vadd.f32 %v142, %v451
  %v453 = vpop.f32.mrf.mxu0
  %v454 = vadd.f32 %v142, %v453
  %455 = vdwg.mxu0
  %456 = vmatpush.bf16.msra.mxu0 %v355
  %457 = vmatpush.bf16.msra.mxu0 %v354
  %458 = vmatpush.bf16.msra.mxu0 %v353
  %459 = vmatpush.bf16.msra.mxu0 %v352
  %460 = vmatpush.bf16.msra.mxu0 %v351
  %461 = vmatpush.bf16.msra.mxu0 %v350
  %462 = vmatpush.bf16.msra.mxu0 %v349
  %463 = vmatpush.bf16.msra.mxu0 %v348
  %464 = vmatmul.bf16.gmra.mxu0 %v36
  %v465 = vpop.f32.mrf.mxu0
  %v466 = vadd.f32 %v452, %v465
  %v467 = vpop.f32.mrf.mxu0
  %v468 = vadd.f32 %v454, %v467
  %469 = vdwg.mxu0
  %470 = vmatpush.bf16.msra.mxu0 %v363
  %471 = vmatpush.bf16.msra.mxu0 %v362
  %472 = vmatpush.bf16.msra.mxu0 %v361
  %473 = vmatpush.bf16.msra.mxu0 %v360
  %474 = vmatpush.bf16.msra.mxu0 %v359
  %475 = vmatpush.bf16.msra.mxu0 %v358
  %476 = vmatpush.bf16.msra.mxu0 %v357
  %477 = vmatpush.bf16.msra.mxu0 %v356
  %478 = vmatmul.bf16.gmra.mxu0 %v37
  %v479 = vpop.f32.mrf.mxu0
  %v480 = vadd.f32 %v466, %v479
  %v481 = vpop.f32.mrf.mxu0
  %v482 = vadd.f32 %v468, %v481
  %483 = vdwg.mxu0
  %484 = vmatpush.bf16.msra.mxu0 %v371
  %485 = vmatpush.bf16.msra.mxu0 %v370
  %486 = vmatpush.bf16.msra.mxu0 %v369
  %487 = vmatpush.bf16.msra.mxu0 %v368
  %488 = vmatpush.bf16.msra.mxu0 %v367
  %489 = vmatpush.bf16.msra.mxu0 %v366
  %490 = vmatpush.bf16.msra.mxu0 %v365
  %491 = vmatpush.bf16.msra.mxu0 %v364
  %492 = vmatmul.bf16.gmra.mxu0 %v38
  %v493 = vpop.f32.mrf.mxu0
  %v494 = vadd.f32 %v480, %v493
  %v495 = vpop.f32.mrf.mxu0
  %v496 = vadd.f32 %v482, %v495
  %497 = vdwg.mxu0
  %498 = vmatpush.bf16.msra.mxu0 %v379
  %499 = vmatpush.bf16.msra.mxu0 %v378
  %500 = vmatpush.bf16.msra.mxu0 %v377
  %501 = vmatpush.bf16.msra.mxu0 %v376
  %502 = vmatpush.bf16.msra.mxu0 %v375
  %503 = vmatpush.bf16.msra.mxu0 %v374
  %504 = vmatpush.bf16.msra.mxu0 %v373
  %505 = vmatpush.bf16.msra.mxu0 %v372
  %506 = vmatmul.bf16.gmra.mxu0 %v39
  %v507 = vpop.f32.mrf.mxu0
  %v508 = vadd.f32 %v494, %v507
  %v509 = vpop.f32.mrf.mxu0
  %v510 = vadd.f32 %v496, %v509
  %511 = vdwg.mxu0
  %512 = vmatpush.bf16.msra.mxu0 %v387
  %513 = vmatpush.bf16.msra.mxu0 %v386
  %514 = vmatpush.bf16.msra.mxu0 %v385
  %515 = vmatpush.bf16.msra.mxu0 %v384
  %516 = vmatpush.bf16.msra.mxu0 %v383
  %517 = vmatpush.bf16.msra.mxu0 %v382
  %518 = vmatpush.bf16.msra.mxu0 %v381
  %519 = vmatpush.bf16.msra.mxu0 %v380
  %520 = vmatmul.bf16.gmra.mxu0 %v40
  %v521 = vpop.f32.mrf.mxu0
  %v522 = vadd.f32 %v508, %v521
  %v523 = vpop.f32.mrf.mxu0
  %v524 = vadd.f32 %v510, %v523
  %525 = vdwg.mxu0
  %526 = vmatpush.bf16.msra.mxu0 0
  %527 = vmatpush.bf16.msra.mxu0 0
  %528 = vmatpush.bf16.msra.mxu0 0
  %529 = vmatpush.bf16.msra.mxu0 0
  %530 = vmatpush.bf16.msra.mxu0 0
  %531 = vmatpush.bf16.msra.mxu0 0
  %532 = vmatpush.bf16.msra.mxu0 0
  %533 = vmatpush.bf16.msra.mxu0 %v388
  %534 = vmatmul.bf16.gmra.mxu0 %v440
  %v535 = vpop.f32.mrf.mxu0
  %v536 = vadd.f32 %v522, %v535
  %v537 = vpop.f32.mrf.mxu0
  %v538 = vadd.f32 %v524, %v537
  %539 = vdwg.mxu0
  %v540 = vmax.f32 %v536, 0.0
  %v541 = vmax.f32 %v538, 0.0
  %v542 = vld [vmem:[%s3] sm:$0xff]
  %v543 = vld [vmem:[%s3 + $0x8] sm:$0xff]
  %v544 = vld [vmem:[%s3 + $0x10] sm:$0xff]
  %v545 = vld [vmem:[%s3 + $0x18] sm:$0xff]
  %v546 = vld [vmem:[%s3 + $0x20] sm:$0xff]
  %v547 = vld [vmem:[%s3 + $0x28] sm:$0xff]
  %v548 = vld [vmem:[%s3 + $0x30] sm:$0xff]
  %v549 = vld [vmem:[%s3 + $0x38] sm:$0xff]
  %v550 = vld [vmem:[%s3 + $0x40] sm:$0xff]
  %v551 = vld [vmem:[%s3 + $0x48] sm:$0xff]
  %v552 = vld [vmem:[%s3 + $0x50] sm:$0xff]
  %v553 = vld [vmem:[%s3 + $0x58] sm:$0xff]
  %v554 = vld [vmem:[%s3 + $0x60] sm:$0xff]
  %v555 = vld [vmem:[%s3 + $0x68] sm:$0xff]
  %v556 = vld [vmem:[%s3 + $0x70] sm:$0xff]
  %v557 = vld [vmem:[%s3 + $0x78] sm:$0xff]
  %v558 = vld [vmem:[%s4] sm:$0x1]
  %v560 = vperm.slane %v558, 0
  %562 = vmatpush.msra.mxu0 %v557
  %563 = vmatpush.msra.mxu0 %v556
  %564 = vmatpush.msra.mxu0 %v555
  %565 = vmatpush.msra.mxu0 %v554
  %566 = vmatpush.msra.mxu0 %v553
  %567 = vmatpush.msra.mxu0 %v552
  %568 = vmatpush.msra.mxu0 %v551
  %569 = vmatpush.msra.mxu0 %v550
  %570 = vmatpush.msra.mxu0 %v549
  %571 = vmatpush.msra.mxu0 %v548
  %572 = vmatpush.msra.mxu0 %v547
  %573 = vmatpush.msra.mxu0 %v546
  %574 = vmatpush.msra.mxu0 %v545
  %575 = vmatpush.msra.mxu0 %v544
  %576 = vmatpush.msra.mxu0 %v543
  %577 = vmatpush.msra.mxu0 %v542
  %578 = vmatmul.f32.gmra.mxu0 %v540
  %v579 = vpop.f32.mrf.mxu0
  %v580 = vadd.f32 %v560, %v579
  %581 = vmatmul.f32.gmra.mxu0 %v541
  %v582 = vpop.f32.mrf.mxu0
  %v583 = vadd.f32 %v560, %v582
  %584 = vdwg.mxu0
  %v585 = vpack.c.bf16 %v580, %v580
  %v586 = vpack.c.bf16 %v583, %v583
  %587 = vst [vmem:[%s5] sm:$0xf] %v585
  %588 = vst [vmem:[%s5 + $0x4] sm:$0xf] %v586
  // Predicated region
  $region22: #{simple_nn_forward.1} parent=0 // pred_check
    _
  $region23: #{simple_nn_forward.1} parent=0 // pred_check_branch
    %590 = sbr.rel (0) target = $region25
  $region24: #{simple_nn_forward.1} parent=0 // pred_region
    _
  $region25: #{simple_nn_forward.1} parent=0 // pred_fallthru
    _
  // Predicated region
  $region26: #{simple_nn_forward.1} parent=0 // pred_check
    _
  $region27: #{simple_nn_forward.1} parent=0 // pred_check_branch
    %592 = sbr.rel (0) target = $region29
  $region28: #{simple_nn_forward.1} parent=0 // pred_region
    _
  $region29: #{simple_nn_forward.1} parent=0 // pred_fallthru
    _

</llo_original>
